<compile_context>
chip_gen: v6e
topology: v6e:2x2x1
jax: 0.10.0
libtpu: 0.0.40
codegen_flags: <defaults>
</compile_context>

<pallas_src>
import jax
import jax.numpy as jnp
from jax.experimental import pallas as pl
from jax.experimental.pallas import tpu as pltpu


def _round_up(x, m):
    return (x + m - 1) // m * m


def fused_linear_kernel(x_ref, w_ref, b_ref, o_ref):
    # One MXU matmul on a [TM, d_in] bf16 tile against the VMEM-resident fused
    # weight, f32 accumulation, bias add, store (d_out < 128 -> masked vst, OK).
    o_ref[...] = (
        jnp.dot(x_ref[...], w_ref[...], preferred_element_type=jnp.float32)
        + b_ref[...]
    ).astype(o_ref.dtype)


def fashion_mnist_model_v0(x_nchw, w1, b1, w2, b2, *, tm_target=1024):
    """Forward pass. x_nchw: [B, C, H, W] float32. Returns [B, output_shape] f32."""
    B = x_nchw.shape[0]
    x_flat = x_nchw.reshape(B, -1)                    # nn.Flatten(): [B, C*H*W]
    d_in = x_flat.shape[1]
    d_out = w2.shape[1]

    # --- Algebraic layer fusion (exact in real arithmetic: no activation) ----
    # y = (x @ w1 + b1) @ w2 + b2  ==  x @ (w1 @ w2) + (b1 @ w2 + b2)
    w_fused = jnp.dot(w1, w2, preferred_element_type=jnp.float32)        # [d_in, d_out]
    b_fused = jnp.dot(b1, w2, preferred_element_type=jnp.float32) + b2   # [1,  d_out]

    # --- bf16 streaming operands, f32 accumulation inside the kernel ---------
    x_bf16 = x_flat.astype(jnp.bfloat16)
    w_bf16 = w_fused.astype(jnp.bfloat16)

    # --- Batch tiling ---------------------------------------------------------
    # Tile rows in multiples of 16 (bf16 sublane packing); cap by padded batch.
    b_pad16 = _round_up(B, 16)
    tm = min(tm_target, b_pad16)
    b_padded = _round_up(b_pad16, tm)
    if b_padded != B:
        x_bf16 = jnp.pad(x_bf16, ((0, b_padded - B), (0, 0)))
    grid = (b_padded // tm,)

    # --- VMEM budget derived from the footprint (2x-buffered x / out blocks,
    #     resident fused weight + bias), with generous headroom. --------------
    block_bytes = (
        2 * (tm * d_in * 2)        # double-buffered bf16 x blocks
        + 2 * (tm * d_out * 4)     # double-buffered f32 out blocks
        + d_in * d_out * 2         # fused weight (bf16), VMEM-resident
        + d_out * 4                # bias
    )
    vmem_limit = int(min(max(4 * block_bytes, 16 << 20), 48 << 20))

    cost = pl.CostEstimate(
        flops=2 * b_padded * d_in * d_out,
        bytes_accessed=(b_padded * d_in * 2          # read x (bf16)
                        + d_in * d_out * 2           # read W (bf16)
                        + d_out * 4                  # read b (f32)
                        + b_padded * d_out * 4),     # write y (f32)
        transcendentals=0,
    )

    out = pl.pallas_call(
        fused_linear_kernel,
        out_shape=jax.ShapeDtypeStruct((b_padded, d_out), jnp.float32),
        grid=grid,
        in_specs=[
            pl.BlockSpec((tm, d_in), lambda i: (i, 0)),       # streamed batch tile
            pl.BlockSpec((d_in, d_out), lambda i: (0, 0)),    # weight stays resident
            pl.BlockSpec((1, d_out), lambda i: (0, 0)),       # bias stays resident
        ],
        out_specs=pl.BlockSpec((tm, d_out), lambda i: (i, 0)),
        compiler_params=pltpu.CompilerParams(
            dimension_semantics=("parallel",),                # shard batch across TCs
            vmem_limit_bytes=vmem_limit,
        ),
        cost_estimate=cost,
    )(x_bf16, w_bf16, b_fused)

    return out[:B]


def init_linear_params(key, fan_in, fan_out):
    """Deterministic init matching torch.nn.Linear: U(-1/sqrt(fan_in), 1/sqrt(fan_in)).
    Weight is returned as [fan_in, fan_out] (transposed vs. torch's [out, in])."""
    kw, kb = jax.random.split(key)
    bound = 1.0 / jnp.sqrt(fan_in)
    w = jax.random.uniform(kw, (fan_in, fan_out), jnp.float32, -bound, bound)
    b = jax.random.uniform(kb, (1, fan_out), jnp.float32, -bound, bound)
    return w, b


if __name__ == "__main__":
    key = jax.random.PRNGKey(0)
    k_x, k_l1, k_l2 = jax.random.split(key, 3)

    # FashionMNIST-like shapes, small batch: [B, 1, 28, 28] -> input_shape=784
    B, C, H, W = 8, 1, 28, 28
    input_shape = C * H * W        # 784
    hidden_units = 32
    output_shape = 10

    x = jax.random.normal(k_x, (B, C, H, W), jnp.float32)
    w1, b1 = init_linear_params(k_l1, input_shape, hidden_units)
    w2, b2 = init_linear_params(k_l2, input_shape=hidden_units, fan_out=output_shape) \
        if False else init_linear_params(k_l2, hidden_units, output_shape)

    out = fashion_mnist_model_v0(x, w1, b1, w2, b2)
    out = jax.block_until_ready(out)

    # Pure-JAX f32 reference of the original two-layer math (Flatten -> Linear -> Linear).
    # Kernel fuses the layers and streams bf16 operands -> allow a small tolerance.
    ref = x.reshape(B, -1) @ w1 + b1
    ref = ref @ w2 + b2
    assert out.shape == (B, output_shape)
    assert jnp.allclose(out, ref, atol=2e-2, rtol=2e-2), (
        f"max abs err {jnp.max(jnp.abs(out - ref))}")

    print("KERNEL_OK")
</pallas_src>

<mosaic_0001>
module attributes {stable_mosaic.version = 11 : i64} {
  func.func @fused_linear_kernel(%arg0: i32, %arg1: memref<16x784xbf16, #tpu.memory_space<vmem>>, %arg2: memref<784x10xbf16, #tpu.memory_space<vmem>>, %arg3: memref<1x10xf32, #tpu.memory_space<vmem>>, %arg4: memref<16x10xf32, #tpu.memory_space<vmem>>) attributes {dimension_semantics = [#tpu.dimension_semantics<parallel>], iteration_bounds = array<i64: 1>, scalar_prefetch = 0 : i64, scratch_operands = 0 : i64, tpu.core_type = #tpu.core_type<tc>, window_params = [{transform_indices = @transform_0, window_bounds = array<i64: 16, 784>}, {pipeline_mode = #tpu.pipeline_mode<synchronous>, transform_indices = @transform_1, window_bounds = array<i64: 784, 10>}, {pipeline_mode = #tpu.pipeline_mode<synchronous>, transform_indices = @transform_2, window_bounds = array<i64: 1, 10>}, {transform_indices = @transform_3, window_bounds = array<i64: 16, 10>}]} {
    %c0 = arith.constant 0 : index
    %c0_0 = arith.constant 0 : index
    %0 = vector.load %arg1[%c0, %c0_0] : memref<16x784xbf16, #tpu.memory_space<vmem>>, vector<16x784xbf16>
    %c0_1 = arith.constant 0 : index
    %c0_2 = arith.constant 0 : index
    %1 = vector.load %arg2[%c0_1, %c0_2] : memref<784x10xbf16, #tpu.memory_space<vmem>>, vector<784x10xbf16>
    %cst = arith.constant dense<0.000000e+00> : vector<16x10xf32>
    %2 = tpu.matmul %0, %1, %cst {dimension_numbers = #tpu.dot_dimension_numbers<[1], [0], [0], [1], [0, 0, 1, 1], [], []>} : vector<16x784xbf16>, vector<784x10xbf16>, vector<16x10xf32> -> vector<16x10xf32>
    %c0_3 = arith.constant 0 : index
    %c0_4 = arith.constant 0 : index
    %3 = vector.load %arg3[%c0_3, %c0_4] : memref<1x10xf32, #tpu.memory_space<vmem>>, vector<1x10xf32>
    %4 = vector.broadcast %3 : vector<1x10xf32> to vector<16x10xf32>
    %5 = arith.addf %2, %4 : vector<16x10xf32>
    %c0_5 = arith.constant 0 : index
    %c0_6 = arith.constant 0 : index
    %6 = vector.load %arg4[%c0_5, %c0_6] : memref<16x10xf32, #tpu.memory_space<vmem>>, vector<16x10xf32>
    tpu.vector_store %arg4[%c0_5, %c0_6], %5 {strides = array<i32>} : memref<16x10xf32, #tpu.memory_space<vmem>>, vector<16x10xf32>,
    return
  }
  func.func @transform_0(%arg0: i32) -> (i32, i32) {
    %c0_i32 = arith.constant 0 : i32
    %c0_i32_0 = arith.constant 0 : i32
    return %arg0, %c0_i32 : i32, i32
  }
  func.func @transform_1(%arg0: i32) -> (i32, i32) {
    %c0_i32 = arith.constant 0 : i32
    %c0_i32_0 = arith.constant 0 : i32
    %c0_i32_1 = arith.constant 0 : i32
    return %c0_i32, %c0_i32_0 : i32, i32
  }
  func.func @transform_2(%arg0: i32) -> (i32, i32) {
    %c0_i32 = arith.constant 0 : i32
    %c0_i32_0 = arith.constant 0 : i32
    %c0_i32_1 = arith.constant 0 : i32
    return %c0_i32, %c0_i32_0 : i32, i32
  }
  func.func @transform_3(%arg0: i32) -> (i32, i32) {
    %c0_i32 = arith.constant 0 : i32
    %c0_i32_0 = arith.constant 0 : i32
    return %arg0, %c0_i32 : i32, i32
  }
}

</mosaic_0001>

<llo_original>
// kernel: tpu_custom_call.1
$region0: #{tpu_custom_call.1}
  #allocation0 [shape = 'u32[]', space=smem, size = 0x4, offset = 0x4, fixed_abs, tag = 'smem constant byte address 0x4 - core index']
  #allocation1 [shape = 'u32[144,128]{1,0:T(1,128)}', space=vmem, size = 0x12000, scoped, tag = 'internal scratch']
  %s0 = inlined_call_operand.vmem [shape: bf16[16,784], index: 0, kind: input, shape index: {}]
  %s1 = inlined_call_operand.vmem [shape: bf16[784,10], index: 1, kind: input, shape index: {}]
  %s2 = inlined_call_operand.vmem [shape: f32[1,10], index: 2, kind: input, shape index: {}]
  %s3 = inlined_call_operand.hbm [shape: f32[16,10], index: 3, kind: output, shape index: {}]
  %s4 = sld [smem:[#allocation0]]
  $region22: #{tpu_custom_call.1} parent=0
    _
  %s6 = ssub.s32 1, %s4
  %s7 = scalar_select 0, %s6, %s4
  $region1: #{tpu_custom_call.1} parent=0
    #allocation2 [shape = 'u8[8192]{0}', space=vmem, size = 0x2000, scoped, tag = 'output window, operand 0, single buffered']
    #allocation3 [shape = 's32[1]{0}', space=sflag, size = 0x4, scoped, tag = 'scoped memory for tpu_custom_call.1']
    %8 = vsyncpa [#allocation3], 0
    // Predicated region
    $region2: #{tpu_custom_call.1} parent=1 // pred_check
      _
    $region3: #{tpu_custom_call.1} parent=1 // pred_check_branch
      %10 = sbr.rel (0) target = $region5
    $region4: #{tpu_custom_call.1} parent=1 // pred_region
      _
    $region5: #{tpu_custom_call.1} parent=1 // pred_fallthru
      _
    // Predicated region
    $region6: #{tpu_custom_call.1} parent=1 // pred_check
      _
    $region7: #{tpu_custom_call.1} parent=1 // pred_check_branch
      %12 = sbr.rel (0) target = $region9
    $region8: #{tpu_custom_call.1} parent=1 // pred_region
      _
    $region9: #{tpu_custom_call.1} parent=1 // pred_fallthru
      _
    // Predicated region
    $region10: #{tpu_custom_call.1} parent=1 // pred_check
      _
    $region11: #{tpu_custom_call.1} parent=1 // pred_check_branch
      %14 = sbr.rel (0) target = $region13
    $region12: #{tpu_custom_call.1} parent=1 // pred_region
      _
    $region13: #{tpu_custom_call.1} parent=1 // pred_fallthru
      _
    %v16 = vld [vmem:[%s0] sm:$0xff]
    %v17 = vld [vmem:[%s0 + $0x8] sm:$0xff]
    %v18 = vld [vmem:[%s0 + $0x10] sm:$0xff]
    %v19 = vld [vmem:[%s0 + $0x18] sm:$0xf]
    %v20 = vld [vmem:[%s0 + $0x1c] sm:$0xff]
    %v21 = vld [vmem:[%s0 + $0x24] sm:$0xff]
    %v22 = vld [vmem:[%s0 + $0x2c] sm:$0xff]
    %v23 = vld [vmem:[%s0 + $0x34] sm:$0xf]
    %v24 = vld [vmem:[%s1] sm:$0xf]
    %v25 = vld [vmem:[%s1 + $0x4] sm:$0xf]
    %v26 = vld [vmem:[%s1 + $0x8] sm:$0xf]
    %v27 = vld [vmem:[%s1 + $0xc] sm:$0xf]
    %v28 = vld [vmem:[%s1 + $0x10] sm:$0xf]
    %v29 = vld [vmem:[%s1 + $0x14] sm:$0xf]
    %v30 = vld [vmem:[%s1 + $0x18] sm:$0xf]
    %v31 = vld [vmem:[%s1 + $0x1c] sm:$0xf]
    %v32 = vld [vmem:[%s1 + $0x20] sm:$0xf]
    %v33 = vld [vmem:[%s1 + $0x24] sm:$0xf]
    %v34 = vld [vmem:[%s1 + $0x28] sm:$0xf]
    %v35 = vld [vmem:[%s1 + $0x2c] sm:$0xf]
    %v36 = vld [vmem:[%s1 + $0x30] sm:$0xf]
    %v37 = vld [vmem:[%s1 + $0x34] sm:$0xf]
    %v38 = vld [vmem:[%s1 + $0x38] sm:$0xf]
    %v39 = vld [vmem:[%s1 + $0x3c] sm:$0xf]
    %v40 = vld [vmem:[%s1 + $0x40] sm:$0xf]
    %v41 = vld [vmem:[%s1 + $0x44] sm:$0xf]
    %v42 = vld [vmem:[%s1 + $0x48] sm:$0xf]
    %v43 = vld [vmem:[%s1 + $0x4c] sm:$0xf]
    %v44 = vld [vmem:[%s1 + $0x50] sm:$0xf]
    %v45 = vld [vmem:[%s1 + $0x54] sm:$0xf]
    %v46 = vld [vmem:[%s1 + $0x58] sm:$0xf]
    %v47 = vld [vmem:[%s1 + $0x5c] sm:$0xf]
    %v48 = vld [vmem:[%s1 + $0x60] sm:$0xf]
    %v49 = vld [vmem:[%s1 + $0x64] sm:$0xf]
    %v50 = vld [vmem:[%s1 + $0x68] sm:$0xf]
    %v51 = vld [vmem:[%s1 + $0x6c] sm:$0xf]
    %v52 = vld [vmem:[%s1 + $0x70] sm:$0xf]
    %v53 = vld [vmem:[%s1 + $0x74] sm:$0xf]
    %v54 = vld [vmem:[%s1 + $0x78] sm:$0xf]
    %v55 = vld [vmem:[%s1 + $0x7c] sm:$0xf]
    %v56 = vld [vmem:[%s1 + $0x80] sm:$0xf]
    %v57 = vld [vmem:[%s1 + $0x84] sm:$0xf]
    %v58 = vld [vmem:[%s1 + $0x88] sm:$0xf]
    %v59 = vld [vmem:[%s1 + $0x8c] sm:$0xf]
    %v60 = vld [vmem:[%s1 + $0x90] sm:$0xf]
    %v61 = vld [vmem:[%s1 + $0x94] sm:$0xf]
    %v62 = vld [vmem:[%s1 + $0x98] sm:$0xf]
    %v63 = vld [vmem:[%s1 + $0x9c] sm:$0xf]
    %v64 = vld [vmem:[%s1 + $0xa0] sm:$0xf]
    %v65 = vld [vmem:[%s1 + $0xa4] sm:$0xf]
    %v66 = vld [vmem:[%s1 + $0xa8] sm:$0xf]
    %v67 = vld [vmem:[%s1 + $0xac] sm:$0xf]
    %v68 = vld [vmem:[%s1 + $0xb0] sm:$0xf]
    %v69 = vld [vmem:[%s1 + $0xb4] sm:$0xf]
    %v70 = vld [vmem:[%s1 + $0xb8] sm:$0xf]
    %v71 = vld [vmem:[%s1 + $0xbc] sm:$0xf]
    %v72 = vld [vmem:[%s1 + $0xc0] sm:$0xf]
    %v73 = vld [vmem:[%s1 + $0xc4] sm:$0xf]
    %v74 = vld [vmem:[%s1 + $0xc8] sm:$0xf]
    %v75 = vld [vmem:[%s1 + $0xcc] sm:$0xf]
    %v76 = vld [vmem:[%s1 + $0xd0] sm:$0xf]
    %v77 = vld [vmem:[%s1 + $0xd4] sm:$0xf]
    %v78 = vld [vmem:[%s1 + $0xd8] sm:$0xf]
    %v79 = vld [vmem:[%s1 + $0xdc] sm:$0xf]
    %v80 = vld [vmem:[%s1 + $0xe0] sm:$0xf]
    %v81 = vld [vmem:[%s1 + $0xe4] sm:$0xf]
    %v82 = vld [vmem:[%s1 + $0xe8] sm:$0xf]
    %v83 = vld [vmem:[%s1 + $0xec] sm:$0xf]
    %v84 = vld [vmem:[%s1 + $0xf0] sm:$0xf]
    %v85 = vld [vmem:[%s1 + $0xf4] sm:$0xf]
    %v86 = vld [vmem:[%s1 + $0xf8] sm:$0xf]
    %v87 = vld [vmem:[%s1 + $0xfc] sm:$0xf]
    %v88 = vld [vmem:[%s1 + $0x100] sm:$0xf]
    %v89 = vld [vmem:[%s1 + $0x104] sm:$0xf]
    %v90 = vld [vmem:[%s1 + $0x108] sm:$0xf]
    %v91 = vld [vmem:[%s1 + $0x10c] sm:$0xf]
    %v92 = vld [vmem:[%s1 + $0x110] sm:$0xf]
    %v93 = vld [vmem:[%s1 + $0x114] sm:$0xf]
    %v94 = vld [vmem:[%s1 + $0x118] sm:$0xf]
    %v95 = vld [vmem:[%s1 + $0x11c] sm:$0xf]
    %v96 = vld [vmem:[%s1 + $0x120] sm:$0xf]
    %v97 = vld [vmem:[%s1 + $0x124] sm:$0xf]
    %v98 = vld [vmem:[%s1 + $0x128] sm:$0xf]
    %v99 = vld [vmem:[%s1 + $0x12c] sm:$0xf]
    %v100 = vld [vmem:[%s1 + $0x130] sm:$0xf]
    %v101 = vld [vmem:[%s1 + $0x134] sm:$0xf]
    %v102 = vld [vmem:[%s1 + $0x138] sm:$0xf]
    %v103 = vld [vmem:[%s1 + $0x13c] sm:$0xf]
    %v104 = vld [vmem:[%s1 + $0x140] sm:$0xf]
    %v105 = vld [vmem:[%s1 + $0x144] sm:$0xf]
    %v106 = vld [vmem:[%s1 + $0x148] sm:$0xf]
    %v107 = vld [vmem:[%s1 + $0x14c] sm:$0xf]
    %v108 = vld [vmem:[%s1 + $0x150] sm:$0xf]
    %v109 = vld [vmem:[%s1 + $0x154] sm:$0xf]
    %v110 = vld [vmem:[%s1 + $0x158] sm:$0xf]
    %v111 = vld [vmem:[%s1 + $0x15c] sm:$0xf]
    %v112 = vld [vmem:[%s1 + $0x160] sm:$0xf]
    %v113 = vld [vmem:[%s1 + $0x164] sm:$0xf]
    %v114 = vld [vmem:[%s1 + $0x168] sm:$0xf]
    %v115 = vld [vmem:[%s1 + $0x16c] sm:$0xf]
    %v116 = vld [vmem:[%s1 + $0x170] sm:$0xf]
    %v117 = vld [vmem:[%s1 + $0x174] sm:$0xf]
    %v118 = vld [vmem:[%s1 + $0x178] sm:$0xf]
    %v119 = vld [vmem:[%s1 + $0x17c] sm:$0xf]
    %v120 = vld [vmem:[%s1 + $0x180] sm:$0xf]
    %v121 = vld [vmem:[%s1 + $0x184] sm:$0xf]
    %v122 = vld [vmem:[%s2] sm:$0x1]
    %v124 = vlaneseq
    %v125 = vshrl.u32 %v124, 7
    %v126 = vsub.s32 0, %v125
    %v127 = vrot.slane %v122, %v126
    %v137 = vunpack.c.l.b16 %v16
    %v138 = vunpack.c.h.b16 %v16
    %v139 = vunpack.c.l.b16 %v17
    %v140 = vunpack.c.h.b16 %v17
    %v141 = vunpack.c.l.b16 %v18
    %v142 = vunpack.c.h.b16 %v18
    %v143 = vunpack.c.l.b16 %v19
    %v144 = vunpack.c.l.b16 %v20
    %v145 = vunpack.c.h.b16 %v20
    %v146 = vunpack.c.l.b16 %v21
    %v147 = vunpack.c.h.b16 %v21
    %v148 = vunpack.c.l.b16 %v22
    %v149 = vunpack.c.h.b16 %v22
    %v150 = vunpack.c.l.b16 %v23
    %v151 = vpack.c.b16 %v144, %v137
    %v152 = vpack.c.b16 %v145, %v138
    %v153 = vpack.c.b16 %v146, %v139
    %v154 = vpack.c.b16 %v147, %v140
    %v155 = vpack.c.b16 %v148, %v141
    %v156 = vpack.c.b16 %v149, %v142
    %v157 = vpack.c.b16 %v150, %v143
    %v262 = vunpack.c.l.b16 %v24
    %v263 = vunpack.c.l.b16 %v25
    %v264 = vunpack.c.l.b16 %v26
    %v265 = vunpack.c.l.b16 %v27
    %v266 = vunpack.c.l.b16 %v28
    %v267 = vunpack.c.l.b16 %v29
    %v268 = vunpack.c.l.b16 %v30
    %v269 = vunpack.c.l.b16 %v31
    %v270 = vunpack.c.l.b16 %v32
    %v271 = vunpack.c.l.b16 %v33
    %v272 = vunpack.c.l.b16 %v34
    %v273 = vunpack.c.l.b16 %v35
    %v274 = vunpack.c.l.b16 %v36
    %v275 = vunpack.c.l.b16 %v37
    %v276 = vunpack.c.l.b16 %v38
    %v277 = vunpack.c.l.b16 %v39
    %v278 = vunpack.c.l.b16 %v40
    %v279 = vunpack.c.l.b16 %v41
    %v280 = vunpack.c.l.b16 %v42
    %v281 = vunpack.c.l.b16 %v43
    %v282 = vunpack.c.l.b16 %v44
    %v283 = vunpack.c.l.b16 %v45
    %v284 = vunpack.c.l.b16 %v46
    %v285 = vunpack.c.l.b16 %v47
    %v286 = vunpack.c.l.b16 %v48
    %v287 = vunpack.c.l.b16 %v49
    %v288 = vunpack.c.l.b16 %v50
    %v289 = vunpack.c.l.b16 %v51
    %v290 = vunpack.c.l.b16 %v52
    %v291 = vunpack.c.l.b16 %v53
    %v292 = vunpack.c.l.b16 %v54
    %v293 = vunpack.c.l.b16 %v55
    %v294 = vunpack.c.l.b16 %v56
    %v295 = vunpack.c.l.b16 %v57
    %v296 = vunpack.c.l.b16 %v58
    %v297 = vunpack.c.l.b16 %v59
    %v298 = vunpack.c.l.b16 %v60
    %v299 = vunpack.c.l.b16 %v61
    %v300 = vunpack.c.l.b16 %v62
    %v301 = vunpack.c.l.b16 %v63
    %v302 = vunpack.c.l.b16 %v64
    %v303 = vunpack.c.l.b16 %v65
    %v304 = vunpack.c.l.b16 %v66
    %v305 = vunpack.c.l.b16 %v67
    %v306 = vunpack.c.l.b16 %v68
    %v307 = vunpack.c.l.b16 %v69
    %v308 = vunpack.c.l.b16 %v70
    %v309 = vunpack.c.l.b16 %v71
    %v310 = vunpack.c.l.b16 %v72
    %v311 = vunpack.c.l.b16 %v73
    %v312 = vunpack.c.l.b16 %v74
    %v313 = vunpack.c.l.b16 %v75
    %v314 = vunpack.c.l.b16 %v76
    %v315 = vunpack.c.l.b16 %v77
    %v316 = vunpack.c.l.b16 %v78
    %v317 = vunpack.c.l.b16 %v79
    %v318 = vunpack.c.l.b16 %v80
    %v319 = vunpack.c.l.b16 %v81
    %v320 = vunpack.c.l.b16 %v82
    %v321 = vunpack.c.l.b16 %v83
    %v322 = vunpack.c.l.b16 %v84
    %v323 = vunpack.c.l.b16 %v85
    %v324 = vunpack.c.l.b16 %v86
    %v325 = vunpack.c.l.b16 %v87
    %v326 = vunpack.c.l.b16 %v88
    %v327 = vunpack.c.l.b16 %v89
    %v328 = vunpack.c.l.b16 %v90
    %v329 = vunpack.c.l.b16 %v91
    %v330 = vunpack.c.l.b16 %v92
    %v331 = vunpack.c.l.b16 %v93
    %v332 = vunpack.c.l.b16 %v94
    %v333 = vunpack.c.l.b16 %v95
    %v334 = vunpack.c.l.b16 %v96
    %v335 = vunpack.c.l.b16 %v97
    %v336 = vunpack.c.l.b16 %v98
    %v337 = vunpack.c.l.b16 %v99
    %v338 = vunpack.c.l.b16 %v100
    %v339 = vunpack.c.l.b16 %v101
    %v340 = vunpack.c.l.b16 %v102
    %v341 = vunpack.c.l.b16 %v103
    %v342 = vunpack.c.l.b16 %v104
    %v343 = vunpack.c.l.b16 %v105
    %v344 = vunpack.c.l.b16 %v106
    %v345 = vunpack.c.l.b16 %v107
    %v346 = vunpack.c.l.b16 %v108
    %v347 = vunpack.c.l.b16 %v109
    %v348 = vunpack.c.l.b16 %v110
    %v349 = vunpack.c.l.b16 %v111
    %v350 = vunpack.c.l.b16 %v112
    %v351 = vunpack.c.l.b16 %v113
    %v352 = vunpack.c.l.b16 %v114
    %v353 = vunpack.c.l.b16 %v115
    %v354 = vunpack.c.l.b16 %v116
    %v355 = vunpack.c.l.b16 %v117
    %v356 = vunpack.c.l.b16 %v118
    %v357 = vunpack.c.l.b16 %v119
    %v358 = vunpack.c.l.b16 %v120
    %v359 = vunpack.c.l.b16 %v121
    %v360 = vpack.c.b16 %v263, %v262
    %v361 = vpack.c.b16 %v265, %v264
    %v362 = vpack.c.b16 %v267, %v266
    %v363 = vpack.c.b16 %v269, %v268
    %v364 = vpack.c.b16 %v271, %v270
    %v365 = vpack.c.b16 %v273, %v272
    %v366 = vpack.c.b16 %v275, %v274
    %v367 = vpack.c.b16 %v277, %v276
    %v368 = vpack.c.b16 %v279, %v278
    %v369 = vpack.c.b16 %v281, %v280
    %v370 = vpack.c.b16 %v283, %v282
    %v371 = vpack.c.b16 %v285, %v284
    %v372 = vpack.c.b16 %v287, %v286
    %v373 = vpack.c.b16 %v289, %v288
    %v374 = vpack.c.b16 %v291, %v290
    %v375 = vpack.c.b16 %v293, %v292
    %v376 = vpack.c.b16 %v295, %v294
    %v377 = vpack.c.b16 %v297, %v296
    %v378 = vpack.c.b16 %v299, %v298
    %v379 = vpack.c.b16 %v301, %v300
    %v380 = vpack.c.b16 %v303, %v302
    %v381 = vpack.c.b16 %v305, %v304
    %v382 = vpack.c.b16 %v307, %v306
    %v383 = vpack.c.b16 %v309, %v308
    %v384 = vpack.c.b16 %v311, %v310
    %v385 = vpack.c.b16 %v313, %v312
    %v386 = vpack.c.b16 %v315, %v314
    %v387 = vpack.c.b16 %v317, %v316
    %v388 = vpack.c.b16 %v319, %v318
    %v389 = vpack.c.b16 %v321, %v320
    %v390 = vpack.c.b16 %v323, %v322
    %v391 = vpack.c.b16 %v325, %v324
    %v392 = vpack.c.b16 %v327, %v326
    %v393 = vpack.c.b16 %v329, %v328
    %v394 = vpack.c.b16 %v331, %v330
    %v395 = vpack.c.b16 %v333, %v332
    %v396 = vpack.c.b16 %v335, %v334
    %v397 = vpack.c.b16 %v337, %v336
    %v398 = vpack.c.b16 %v339, %v338
    %v399 = vpack.c.b16 %v341, %v340
    %v400 = vpack.c.b16 %v343, %v342
    %v401 = vpack.c.b16 %v345, %v344
    %v402 = vpack.c.b16 %v347, %v346
    %v403 = vpack.c.b16 %v349, %v348
    %v404 = vpack.c.b16 %v351, %v350
    %v405 = vpack.c.b16 %v353, %v352
    %v406 = vpack.c.b16 %v355, %v354
    %v407 = vpack.c.b16 %v357, %v356
    %v408 = vpack.c.b16 %v359, %v358
    %vm458 = vcmask 130048
    %v460 = vsel %vm458, %v157, 0
    %462 = vmatprep.subr.bf16.mxu0 0
    %463 = vmatpush1.bf16.msra.mxu0 %v367
    %464 = vmatprep.subr.bf16.mxu0 0
    %465 = vmatpush1.bf16.msra.mxu0 %v366
    %466 = vmatprep.subr.bf16.mxu0 0
    %467 = vmatpush1.bf16.msra.mxu0 %v365
    %468 = vmatprep.subr.bf16.mxu0 0
    %469 = vmatpush1.bf16.msra.mxu0 %v364
    %470 = vmatprep.subr.bf16.mxu0 0
    %471 = vmatpush1.bf16.msra.mxu0 %v363
    %472 = vmatprep.subr.bf16.mxu0 0
    %473 = vmatpush1.bf16.msra.mxu0 %v362
    %474 = vmatprep.subr.bf16.mxu0 0
    %475 = vmatpush1.bf16.msra.mxu0 %v361
    %476 = vmatprep.subr.bf16.mxu0 0
    %477 = vmatpush1.bf16.msra.mxu0 %v360
    %478 = vmatprep.subr.bf16.mxu0 0
    %479 = vmatpush2.bf16.msra.mxu0 %v375
    %480 = vmatprep.subr.bf16.mxu0 0
    %481 = vmatpush2.bf16.msra.mxu0 %v374
    %482 = vmatprep.subr.bf16.mxu0 0
    %483 = vmatpush2.bf16.msra.mxu0 %v373
    %484 = vmatprep.subr.bf16.mxu0 0
    %485 = vmatpush2.bf16.msra.mxu0 %v372
    %486 = vmatprep.subr.bf16.mxu0 0
    %487 = vmatpush2.bf16.msra.mxu0 %v371
    %488 = vmatprep.subr.bf16.mxu0 0
    %489 = vmatpush2.bf16.msra.mxu0 %v370
    %490 = vmatprep.subr.bf16.mxu0 0
    %491 = vmatpush2.bf16.msra.mxu0 %v369
    %492 = vmatprep.subr.bf16.mxu0 0
    %493 = vmatpush2.bf16.msra.mxu0 %v368
    %494 = vmatprep.mubr.bf16.mxu0 %v152
    %495 = vmatmul.mubr.bf16.gmra.mxu0 %v151
    %v496 = vpop.f32.mrf.mxu0
    %v497 = vadd.f32 %v127, %v496
    %v498 = vpop.f32.mrf.mxu0
    %v499 = vpop.f32.mrf.mxu0
    %v500 = vadd.f32 %v127, %v499
    %v501 = vpop.f32.mrf.mxu0
    %502 = vdwg.mxu0
    %503 = vmatprep.subr.bf16.mxu0 0
    %504 = vmatpush1.bf16.msra.mxu0 %v383
    %505 = vmatprep.subr.bf16.mxu0 0
    %506 = vmatpush1.bf16.msra.mxu0 %v382
    %507 = vmatprep.subr.bf16.mxu0 0
    %508 = vmatpush1.bf16.msra.mxu0 %v381
    %509 = vmatprep.subr.bf16.mxu0 0
    %510 = vmatpush1.bf16.msra.mxu0 %v380
    %511 = vmatprep.subr.bf16.mxu0 0
    %512 = vmatpush1.bf16.msra.mxu0 %v379
    %513 = vmatprep.subr.bf16.mxu0 0
    %514 = vmatpush1.bf16.msra.mxu0 %v378
    %515 = vmatprep.subr.bf16.mxu0 0
    %516 = vmatpush1.bf16.msra.mxu0 %v377
    %517 = vmatprep.subr.bf16.mxu0 0
    %518 = vmatpush1.bf16.msra.mxu0 %v376
    %519 = vmatprep.subr.bf16.mxu0 0
    %520 = vmatpush2.bf16.msra.mxu0 %v391
    %521 = vmatprep.subr.bf16.mxu0 0
    %522 = vmatpush2.bf16.msra.mxu0 %v390
    %523 = vmatprep.subr.bf16.mxu0 0
    %524 = vmatpush2.bf16.msra.mxu0 %v389
    %525 = vmatprep.subr.bf16.mxu0 0
    %526 = vmatpush2.bf16.msra.mxu0 %v388
    %527 = vmatprep.subr.bf16.mxu0 0
    %528 = vmatpush2.bf16.msra.mxu0 %v387
    %529 = vmatprep.subr.bf16.mxu0 0
    %530 = vmatpush2.bf16.msra.mxu0 %v386
    %531 = vmatprep.subr.bf16.mxu0 0
    %532 = vmatpush2.bf16.msra.mxu0 %v385
    %533 = vmatprep.subr.bf16.mxu0 0
    %534 = vmatpush2.bf16.msra.mxu0 %v384
    %535 = vmatprep.mubr.bf16.mxu0 %v154
    %536 = vmatmul.mubr.bf16.gmra.mxu0 %v153
    %v537 = vpop.f32.mrf.mxu0
    %v538 = vadd.f32 %v497, %v537
    %v539 = vpop.f32.mrf.mxu0
    %v540 = vpop.f32.mrf.mxu0
    %v541 = vadd.f32 %v500, %v540
    %v542 = vpop.f32.mrf.mxu0
    %543 = vdwg.mxu0
    %544 = vmatprep.subr.bf16.mxu0 0
    %545 = vmatpush1.bf16.msra.mxu0 %v399
    %546 = vmatprep.subr.bf16.mxu0 0
    %547 = vmatpush1.bf16.msra.mxu0 %v398
    %548 = vmatprep.subr.bf16.mxu0 0
    %549 = vmatpush1.bf16.msra.mxu0 %v397
    %550 = vmatprep.subr.bf16.mxu0 0
    %551 = vmatpush1.bf16.msra.mxu0 %v396
    %552 = vmatprep.subr.bf16.mxu0 0
    %553 = vmatpush1.bf16.msra.mxu0 %v395
    %554 = vmatprep.subr.bf16.mxu0 0
    %555 = vmatpush1.bf16.msra.mxu0 %v394
    %556 = vmatprep.subr.bf16.mxu0 0
    %557 = vmatpush1.bf16.msra.mxu0 %v393
    %558 = vmatprep.subr.bf16.mxu0 0
    %559 = vmatpush1.bf16.msra.mxu0 %v392
    %560 = vmatprep.subr.bf16.mxu0 0
    %561 = vmatpush2.bf16.msra.mxu0 %v407
    %562 = vmatprep.subr.bf16.mxu0 0
    %563 = vmatpush2.bf16.msra.mxu0 %v406
    %564 = vmatprep.subr.bf16.mxu0 0
    %565 = vmatpush2.bf16.msra.mxu0 %v405
    %566 = vmatprep.subr.bf16.mxu0 0
    %567 = vmatpush2.bf16.msra.mxu0 %v404
    %568 = vmatprep.subr.bf16.mxu0 0
    %569 = vmatpush2.bf16.msra.mxu0 %v403
    %570 = vmatprep.subr.bf16.mxu0 0
    %571 = vmatpush2.bf16.msra.mxu0 %v402
    %572 = vmatprep.subr.bf16.mxu0 0
    %573 = vmatpush2.bf16.msra.mxu0 %v401
    %574 = vmatprep.subr.bf16.mxu0 0
    %575 = vmatpush2.bf16.msra.mxu0 %v400
    %576 = vmatprep.mubr.bf16.mxu0 %v156
    %577 = vmatmul.mubr.bf16.gmra.mxu0 %v155
    %v578 = vpop.f32.mrf.mxu0
    %v579 = vadd.f32 %v538, %v578
    %v580 = vpop.f32.mrf.mxu0
    %v581 = vpop.f32.mrf.mxu0
    %v582 = vadd.f32 %v541, %v581
    %v583 = vpop.f32.mrf.mxu0
    %584 = vdwg.mxu0
    %585 = vmatprep.subr.bf16.mxu0 0
    %586 = vmatpush1.bf16.msra.mxu0 0
    %587 = vmatprep.subr.bf16.mxu0 0
    %588 = vmatpush1.bf16.msra.mxu0 0
    %589 = vmatprep.subr.bf16.mxu0 0
    %590 = vmatpush1.bf16.msra.mxu0 0
    %591 = vmatprep.subr.bf16.mxu0 0
    %592 = vmatpush1.bf16.msra.mxu0 0
    %593 = vmatprep.subr.bf16.mxu0 0
    %594 = vmatpush1.bf16.msra.mxu0 0
    %595 = vmatprep.subr.bf16.mxu0 0
    %596 = vmatpush1.bf16.msra.mxu0 0
    %597 = vmatprep.subr.bf16.mxu0 0
    %598 = vmatpush1.bf16.msra.mxu0 0
    %599 = vmatprep.subr.bf16.mxu0 0
    %600 = vmatpush1.bf16.msra.mxu0 %v408
    %601 = vmatprep.subr.bf16.mxu0 0
    %602 = vmatpush2.bf16.msra.mxu0 0
    %603 = vmatprep.subr.bf16.mxu0 0
    %604 = vmatpush2.bf16.msra.mxu0 0
    %605 = vmatprep.subr.bf16.mxu0 0
    %606 = vmatpush2.bf16.msra.mxu0 0
    %607 = vmatprep.subr.bf16.mxu0 0
    %608 = vmatpush2.bf16.msra.mxu0 0
    %609 = vmatprep.subr.bf16.mxu0 0
    %610 = vmatpush2.bf16.msra.mxu0 0
    %611 = vmatprep.subr.bf16.mxu0 0
    %612 = vmatpush2.bf16.msra.mxu0 0
    %613 = vmatprep.subr.bf16.mxu0 0
    %614 = vmatpush2.bf16.msra.mxu0 0
    %615 = vmatprep.subr.bf16.mxu0 0
    %616 = vmatpush2.bf16.msra.mxu0 0
    %617 = vmatprep.mubr.bf16.mxu0 0
    %618 = vmatmul.mubr.bf16.gmra.mxu0 %v460
    %v619 = vpop.f32.mrf.mxu0
    %v620 = vadd.f32 %v579, %v619
    %v621 = vpop.f32.mrf.mxu0
    %v622 = vpop.f32.mrf.mxu0
    %v623 = vadd.f32 %v582, %v622
    %v624 = vpop.f32.mrf.mxu0
    %625 = vdwg.mxu0
    %vm626 = vcmask 80896
    %627 = vst.msk [vmem:[#allocation2] sm:$0xff] %vm626, %v620
    %628 = vst.msk [vmem:[#allocation2 + $0x8] sm:$0xff] %vm626, %v623
    // Predicated region
    $region14: #{tpu_custom_call.1} parent=1 // pred_check
      _
    $region15: #{tpu_custom_call.1} parent=1 // pred_check_branch
      %630 = sbr.rel (0) target = $region17
    $region16: #{tpu_custom_call.1} parent=1 // pred_region
      %s632 = ssub.s32 256, 256
      %633 = vsyncadd [#allocation3], %s632
      %s634 = sshll.u32 [#allocation2], 4
      %s635 = int_to_ptr.vmem [resolvable:$true] %s634
      %640 = dma.vmem_to_hbm [thread:$0]  %s635, 256, %s3, [#allocation3], 128, 128, 8
    $region17: #{tpu_custom_call.1} parent=1 // pred_fallthru
      _
    // Predicated region
    $region18: #{tpu_custom_call.1} parent=1 // pred_check
      _
    $region19: #{tpu_custom_call.1} parent=1 // pred_check_branch
      %642 = sbr.rel (0) target = $region21
    $region20: #{tpu_custom_call.1} parent=1 // pred_region
      %643 = dma.done [#allocation3], 256
    $region21: #{tpu_custom_call.1} parent=1 // pred_fallthru
      _
    %644 = vsyncpa [#allocation3], 1

</llo_original>
